<compile_context>
chip_gen: v5e
topology: v5e:2x2
jax: 0.10.0
libtpu: 0.0.40
codegen_flags: <defaults>
</compile_context>

<pallas_src>
import functools

import jax
import jax.numpy as jnp
from jax.experimental import pallas as pl
from jax.experimental.pallas import tpu as pltpu

H1_PAD = 512   # 400 padded to a lane multiple
H2_PAD = 384   # 300 padded to a lane multiple


def _round_up(n, m):
    return ((n + m - 1) // m) * m


def _critic_kernel(x_ref, u_ref, w1x_ref, w1u_ref, b1_ref,
                   w2_ref, b2_ref, w3_ref, b3_ref, o_ref):
    x = x_ref[...]                      # (TB, state_dim) f32
    u = u_ref[...]                      # (TB, action_dim) f32

    # l1 on the VPU: K <= 4 broadcast-FMAs over the (TB, H1_PAD) tile replace
    # two tiny-K MXU dots (which would cost ~ as many pushes as all of l2).
    h1 = jnp.broadcast_to(b1_ref[...], (x.shape[0], b1_ref.shape[1]))
    for k in range(x.shape[1]):
        h1 = h1 + x[:, k:k + 1] * w1x_ref[k:k + 1, :]
    for k in range(u.shape[1]):
        h1 = h1 + u[:, k:k + 1] * w1u_ref[k:k + 1, :]
    h1 = jnp.maximum(h1, 0.0)

    # l2 on the MXU: bf16 operands, f32 accumulation.
    h2 = jnp.dot(h1.astype(jnp.bfloat16), w2_ref[...],
                 preferred_element_type=jnp.float32) + b2_ref[...]
    h2 = jnp.maximum(h2, 0.0)

    # l3 (300 -> 1): VPU multiply + cross-lane (XLU) reduce; w3 row kept f32.
    q = jnp.sum(h2 * w3_ref[...], axis=-1, keepdims=True) + b3_ref[...]
    o_ref[...] = q.astype(o_ref.dtype)
    # TODO(synk): output lane width is 1 -> masked store; acceptable since the
    # q-value output volume is only B*4 bytes (transposed layout is a follow-up).


def _pick_batch_tile(B):
    if B <= 256:
        # Small batch: one tile; launch overhead dominates anyway.
        return _round_up(max(B, 8), 8)
    # Guarantee >= 2 grid steps (v7x megacore sharding via "parallel") while
    # keeping tiles large (up to 1024 rows) to amortize the ~0.35us/step
    # overhead on v5e/v6e.  VMEM stays in single-digit MB even at TB=1024.
    return min(1024, _round_up((B + 1) // 2, 8))


def critic_forward(x, u, params):
    """x: (B, state_dim) f32, u: (B, action_dim) f32 -> (B, 1) f32."""
    w1x, w1u, b1, w2, b2, w3, b3 = params
    B, state_dim = x.shape
    action_dim = u.shape[1]

    TB = _pick_batch_tile(B)
    B_pad = _round_up(B, TB)
    if B_pad != B:
        x = jnp.pad(x, ((0, B_pad - B), (0, 0)))
        u = jnp.pad(u, ((0, B_pad - B), (0, 0)))

    weight_bytes = sum(int(p.size) * p.dtype.itemsize for p in params)
    cost = pl.CostEstimate(
        flops=2 * B_pad * ((state_dim + action_dim) * H1_PAD
                           + H1_PAD * H2_PAD + H2_PAD),
        transcendentals=0,
        bytes_accessed=int((x.size + u.size + B_pad) * 4 + weight_bytes),
    )

    const = lambda shape: pl.BlockSpec(shape, lambda i: (0, 0))
    out = pl.pallas_call(
        _critic_kernel,
        out_shape=jax.ShapeDtypeStruct((B_pad, 1), jnp.float32),
        grid=(B_pad // TB,),
        in_specs=[
            pl.BlockSpec((TB, state_dim), lambda i: (i, 0)),
            pl.BlockSpec((TB, action_dim), lambda i: (i, 0)),
            const(w1x.shape), const(w1u.shape), const(b1.shape),
            const(w2.shape), const(b2.shape),
            const(w3.shape), const(b3.shape),
        ],
        out_specs=pl.BlockSpec((TB, 1), lambda i: (i, 0)),
        compiler_params=pltpu.CompilerParams(
            dimension_semantics=("parallel",)),
        cost_estimate=cost,
    )(x, u, w1x, w1u, b1, w2, b2, w3, b3)
    return out[:B]


def init_critic_params(key, state_dim, action_dim):
    """PyTorch nn.Linear default init (U(-1/sqrt(fan_in), +1/sqrt(fan_in))),
    generated at logical sizes, then repacked for the kernel:
      - w1 split into w1x/w1u (concat-free l1), zero-padded 400 -> 512, kept
        f32 (l1 runs on the VPU)
      - w2 zero-padded (400,300) -> (512,384), bf16 (MXU operand)
      - w3 stored as a (1, 384) f32 row for the VPU reduction
      - biases f32, zero-padded
    Zero padding is numerically exact (padded hidden units stay 0 after ReLU).
    Returns (kernel_params, logical_params)."""
    def linear(k, fan_in, fan_out):
        kw, kb = jax.random.split(k)
        bound = 1.0 / float(fan_in) ** 0.5
        w = jax.random.uniform(kw, (fan_in, fan_out), jnp.float32, -bound, bound)
        b = jax.random.uniform(kb, (1, fan_out), jnp.float32, -bound, bound)
        return w, b

    k1, k2, k3 = jax.random.split(key, 3)
    w1, b1 = linear(k1, state_dim + action_dim, 400)
    w2, b2 = linear(k2, 400, 300)
    w3, b3 = linear(k3, 300, 1)
    logical = (w1, b1, w2, b2, w3, b3)

    p1 = H1_PAD - 400
    p2 = H2_PAD - 300
    w1x = jnp.pad(w1[:state_dim], ((0, 0), (0, p1)))            # f32 (VPU l1)
    w1u = jnp.pad(w1[state_dim:], ((0, 0), (0, p1)))            # f32 (VPU l1)
    b1p = jnp.pad(b1, ((0, 0), (0, p1)))
    w2p = jnp.pad(w2, ((0, p1), (0, p2))).astype(jnp.bfloat16)  # MXU operand
    b2p = jnp.pad(b2, ((0, 0), (0, p2)))
    w3p = jnp.pad(w3.T, ((0, 0), (0, p2)))                      # (1, H2_PAD) f32
    kernel_params = (w1x, w1u, b1p, w2p, b2p, w3p, b3)
    return kernel_params, logical


def critic_ref_matched(x, u, kernel_params):
    """Pure-JAX reference using the same quantization/casts as the kernel
    (differences are only in accumulation order)."""
    w1x, w1u, b1, w2, b2, w3, b3 = kernel_params
    h1 = x @ w1x + u @ w1u + b1                                  # f32 (VPU path)
    h1 = jnp.maximum(h1, 0.0)
    h2 = jnp.dot(h1.astype(jnp.bfloat16), w2,
                 preferred_element_type=jnp.float32) + b2
    h2 = jnp.maximum(h2, 0.0)
    return jnp.sum(h2 * w3, axis=-1, keepdims=True) + b3


def critic_ref_f32(x, u, logical_params):
    """PyTorch-semantics f32 reference (cat + 3 Linear layers)."""
    w1, b1, w2, b2, w3, b3 = logical_params
    h = jnp.concatenate((x, u), axis=1)
    h = jnp.maximum(h @ w1 + b1, 0.0)
    h = jnp.maximum(h @ w2 + b2, 0.0)
    return h @ w3 + b3


if __name__ == "__main__":
    # Pendulum-v1: state_dim=3, action_dim=1; small batch
    state_dim, action_dim, batch = 3, 1, 8

    key = jax.random.PRNGKey(0)
    kx, ku, kp = jax.random.split(key, 3)
    x = jax.random.normal(kx, (batch, state_dim), jnp.float32)
    u = jax.random.normal(ku, (batch, action_dim), jnp.float32)
    kernel_params, logical_params = init_critic_params(kp, state_dim, action_dim)

    fwd = jax.jit(functools.partial(critic_forward, params=kernel_params))
    q = fwd(x, u)
    jax.block_until_ready(q)

    assert q.shape == (batch, 1)

    # Exact-math check vs. a reference using identical bf16 quantization of l2.
    q_matched = critic_ref_matched(x, u, kernel_params)
    assert jnp.allclose(q, q_matched, atol=1e-3, rtol=1e-3), (q, q_matched)

    # Loose check vs. the f32 PyTorch-semantics reference (bf16 l2-weight error).
    q_f32 = critic_ref_f32(x, u, logical_params)
    assert jnp.allclose(q, q_f32, atol=2e-2, rtol=2e-2), (q, q_f32)

    print("KERNEL_OK")
</pallas_src>

<mosaic_0001>
module attributes {stable_mosaic.version = 11 : i64} {
  func.func @_critic_kernel(%arg0: i32, %arg1: memref<8x3xf32, #tpu.memory_space<vmem>>, %arg2: memref<8x1xf32, #tpu.memory_space<vmem>>, %arg3: memref<3x512xf32, #tpu.memory_space<vmem>>, %arg4: memref<1x512xf32, #tpu.memory_space<vmem>>, %arg5: memref<1x512xf32, #tpu.memory_space<vmem>>, %arg6: memref<512x384xbf16, #tpu.memory_space<vmem>>, %arg7: memref<1x384xf32, #tpu.memory_space<vmem>>, %arg8: memref<1x384xf32, #tpu.memory_space<vmem>>, %arg9: memref<1x1xf32, #tpu.memory_space<vmem>>, %arg10: memref<8x1xf32, #tpu.memory_space<vmem>>) attributes {dimension_semantics = [#tpu.dimension_semantics<parallel>], iteration_bounds = array<i64: 1>, scalar_prefetch = 0 : i64, scratch_operands = 0 : i64, tpu.core_type = #tpu.core_type<tc>, window_params = [{transform_indices = @transform_0, window_bounds = array<i64: 8, 3>}, {transform_indices = @transform_1, window_bounds = array<i64: 8, 1>}, {pipeline_mode = #tpu.pipeline_mode<synchronous>, transform_indices = @transform_2, window_bounds = array<i64: 3, 512>}, {pipeline_mode = #tpu.pipeline_mode<synchronous>, transform_indices = @transform_3, window_bounds = array<i64: 1, 512>}, {pipeline_mode = #tpu.pipeline_mode<synchronous>, transform_indices = @transform_4, window_bounds = array<i64: 1, 512>}, {pipeline_mode = #tpu.pipeline_mode<synchronous>, transform_indices = @transform_5, window_bounds = array<i64: 512, 384>}, {pipeline_mode = #tpu.pipeline_mode<synchronous>, transform_indices = @transform_6, window_bounds = array<i64: 1, 384>}, {pipeline_mode = #tpu.pipeline_mode<synchronous>, transform_indices = @transform_7, window_bounds = array<i64: 1, 384>}, {pipeline_mode = #tpu.pipeline_mode<synchronous>, transform_indices = @transform_8, window_bounds = array<i64: 1, 1>}, {transform_indices = @transform_9, window_bounds = array<i64: 8, 1>}]} {
    %c0 = arith.constant 0 : index
    %c0_0 = arith.constant 0 : index
    %0 = vector.load %arg1[%c0, %c0_0] : memref<8x3xf32, #tpu.memory_space<vmem>>, vector<8x3xf32>
    %c0_1 = arith.constant 0 : index
    %c0_2 = arith.constant 0 : index
    %1 = vector.load %arg2[%c0_1, %c0_2] : memref<8x1xf32, #tpu.memory_space<vmem>>, vector<8x1xf32>
    %c0_3 = arith.constant 0 : index
    %c0_4 = arith.constant 0 : index
    %2 = vector.load %arg5[%c0_3, %c0_4] : memref<1x512xf32, #tpu.memory_space<vmem>>, vector<1x512xf32>
    %3 = vector.shape_cast %2 : vector<1x512xf32> to vector<1x512xf32>
    %4 = vector.broadcast %3 : vector<1x512xf32> to vector<8x512xf32>
    %5 = vector.extract_strided_slice %0 {offsets = [0, 0], sizes = [8, 1], strides = [1, 1]} : vector<8x3xf32> to vector<8x1xf32>
    %c0_5 = arith.constant 0 : index
    %c0_6 = arith.constant 0 : index
    %6 = vector.load %arg3[%c0_5, %c0_6] : memref<3x512xf32, #tpu.memory_space<vmem>>, vector<1x512xf32>
    %7 = vector.broadcast %5 : vector<8x1xf32> to vector<8x512xf32>
    %8 = vector.broadcast %6 : vector<1x512xf32> to vector<8x512xf32>
    %9 = arith.mulf %7, %8 : vector<8x512xf32>
    %10 = arith.addf %4, %9 : vector<8x512xf32>
    %11 = vector.extract_strided_slice %0 {offsets = [0, 1], sizes = [8, 1], strides = [1, 1]} : vector<8x3xf32> to vector<8x1xf32>
    %c1 = arith.constant 1 : index
    %c0_7 = arith.constant 0 : index
    %12 = vector.load %arg3[%c1, %c0_7] : memref<3x512xf32, #tpu.memory_space<vmem>>, vector<1x512xf32>
    %13 = vector.broadcast %11 : vector<8x1xf32> to vector<8x512xf32>
    %14 = vector.broadcast %12 : vector<1x512xf32> to vector<8x512xf32>
    %15 = arith.mulf %13, %14 : vector<8x512xf32>
    %16 = arith.addf %10, %15 : vector<8x512xf32>
    %17 = vector.extract_strided_slice %0 {offsets = [0, 2], sizes = [8, 1], strides = [1, 1]} : vector<8x3xf32> to vector<8x1xf32>
    %c2 = arith.constant 2 : index
    %c0_8 = arith.constant 0 : index
    %18 = vector.load %arg3[%c2, %c0_8] : memref<3x512xf32, #tpu.memory_space<vmem>>, vector<1x512xf32>
    %19 = vector.broadcast %17 : vector<8x1xf32> to vector<8x512xf32>
    %20 = vector.broadcast %18 : vector<1x512xf32> to vector<8x512xf32>
    %21 = arith.mulf %19, %20 : vector<8x512xf32>
    %22 = arith.addf %16, %21 : vector<8x512xf32>
    %c0_9 = arith.constant 0 : index
    %c0_10 = arith.constant 0 : index
    %23 = vector.load %arg4[%c0_9, %c0_10] : memref<1x512xf32, #tpu.memory_space<vmem>>, vector<1x512xf32>
    %24 = vector.broadcast %1 : vector<8x1xf32> to vector<8x512xf32>
    %25 = vector.broadcast %23 : vector<1x512xf32> to vector<8x512xf32>
    %26 = arith.mulf %24, %25 : vector<8x512xf32>
    %27 = arith.addf %22, %26 : vector<8x512xf32>
    %cst = arith.constant 0.000000e+00 : f32
    %28 = vector.broadcast %cst : f32 to vector<8x512xf32>
    %29 = arith.maximumf %27, %28 : vector<8x512xf32>
    %30 = arith.truncf %29 : vector<8x512xf32> to vector<8x512xbf16>
    %c0_11 = arith.constant 0 : index
    %c0_12 = arith.constant 0 : index
    %31 = vector.load %arg6[%c0_11, %c0_12] : memref<512x384xbf16, #tpu.memory_space<vmem>>, vector<512x384xbf16>
    %cst_13 = arith.constant dense<0.000000e+00> : vector<8x384xf32>
    %32 = tpu.matmul %30, %31, %cst_13 {dimension_numbers = #tpu.dot_dimension_numbers<[1], [0], [0], [1], [0, 0, 1, 1], [], []>} : vector<8x512xbf16>, vector<512x384xbf16>, vector<8x384xf32> -> vector<8x384xf32>
    %c0_14 = arith.constant 0 : index
    %c0_15 = arith.constant 0 : index
    %33 = vector.load %arg7[%c0_14, %c0_15] : memref<1x384xf32, #tpu.memory_space<vmem>>, vector<1x384xf32>
    %34 = vector.broadcast %33 : vector<1x384xf32> to vector<8x384xf32>
    %35 = arith.addf %32, %34 : vector<8x384xf32>
    %cst_16 = arith.constant 0.000000e+00 : f32
    %36 = vector.broadcast %cst_16 : f32 to vector<8x384xf32>
    %37 = arith.maximumf %35, %36 : vector<8x384xf32>
    %c0_17 = arith.constant 0 : index
    %c0_18 = arith.constant 0 : index
    %38 = vector.load %arg8[%c0_17, %c0_18] : memref<1x384xf32, #tpu.memory_space<vmem>>, vector<1x384xf32>
    %39 = vector.broadcast %38 : vector<1x384xf32> to vector<8x384xf32>
    %40 = arith.mulf %37, %39 : vector<8x384xf32>
    %cst_19 = arith.constant dense<0.000000e+00> : vector<8xf32>
    %41 = vector.multi_reduction <add>, %40, %cst_19 [1] : vector<8x384xf32> to vector<8xf32>
    %42 = vector.shape_cast %41 : vector<8xf32> to vector<8x1xf32>
    %c0_20 = arith.constant 0 : index
    %c0_21 = arith.constant 0 : index
    %43 = vector.load %arg9[%c0_20, %c0_21] : memref<1x1xf32, #tpu.memory_space<vmem>>, vector<1x1xf32>
    %44 = vector.broadcast %43 : vector<1x1xf32> to vector<8x1xf32>
    %45 = arith.addf %42, %44 : vector<8x1xf32>
    %c0_22 = arith.constant 0 : index
    %c0_23 = arith.constant 0 : index
    %46 = vector.load %arg10[%c0_22, %c0_23] : memref<8x1xf32, #tpu.memory_space<vmem>>, vector<8x1xf32>
    tpu.vector_store %arg10[%c0_22, %c0_23], %45 {strides = array<i32>} : memref<8x1xf32, #tpu.memory_space<vmem>>, vector<8x1xf32>,
    return
  }
  func.func @transform_0(%arg0: i32) -> (i32, i32) {
    %c0_i32 = arith.constant 0 : i32
    %c0_i32_0 = arith.constant 0 : i32
    return %arg0, %c0_i32 : i32, i32
  }
  func.func @transform_1(%arg0: i32) -> (i32, i32) {
    %c0_i32 = arith.constant 0 : i32
    %c0_i32_0 = arith.constant 0 : i32
    return %arg0, %c0_i32 : i32, i32
  }
  func.func @transform_2(%arg0: i32) -> (i32, i32) {
    %c0_i32 = arith.constant 0 : i32
    %c0_i32_0 = arith.constant 0 : i32
    %c0_i32_1 = arith.constant 0 : i32
    return %c0_i32, %c0_i32_0 : i32, i32
  }
  func.func @transform_3(%arg0: i32) -> (i32, i32) {
    %c0_i32 = arith.constant 0 : i32
    %c0_i32_0 = arith.constant 0 : i32
    %c0_i32_1 = arith.constant 0 : i32
    return %c0_i32, %c0_i32_0 : i32, i32
  }
  func.func @transform_4(%arg0: i32) -> (i32, i32) {
    %c0_i32 = arith.constant 0 : i32
    %c0_i32_0 = arith.constant 0 : i32
    %c0_i32_1 = arith.constant 0 : i32
    return %c0_i32, %c0_i32_0 : i32, i32
  }
  func.func @transform_5(%arg0: i32) -> (i32, i32) {
    %c0_i32 = arith.constant 0 : i32
    %c0_i32_0 = arith.constant 0 : i32
    %c0_i32_1 = arith.constant 0 : i32
    return %c0_i32, %c0_i32_0 : i32, i32
  }
  func.func @transform_6(%arg0: i32) -> (i32, i32) {
    %c0_i32 = arith.constant 0 : i32
    %c0_i32_0 = arith.constant 0 : i32
    %c0_i32_1 = arith.constant 0 : i32
    return %c0_i32, %c0_i32_0 : i32, i32
  }
  func.func @transform_7(%arg0: i32) -> (i32, i32) {
    %c0_i32 = arith.constant 0 : i32
    %c0_i32_0 = arith.constant 0 : i32
    %c0_i32_1 = arith.constant 0 : i32
    return %c0_i32, %c0_i32_0 : i32, i32
  }
  func.func @transform_8(%arg0: i32) -> (i32, i32) {
    %c0_i32 = arith.constant 0 : i32
    %c0_i32_0 = arith.constant 0 : i32
    %c0_i32_1 = arith.constant 0 : i32
    return %c0_i32, %c0_i32_0 : i32, i32
  }
  func.func @transform_9(%arg0: i32) -> (i32, i32) {
    %c0_i32 = arith.constant 0 : i32
    %c0_i32_0 = arith.constant 0 : i32
    return %arg0, %c0_i32 : i32, i32
  }
}

</mosaic_0001>

<llo_original>
// kernel: critic_forward.1
$region0: #{critic_forward.1}
  #allocation0 [shape = 'u32[]', space=smem, size = 0x4, offset = 0x4, fixed_abs, tag = 'smem constant byte address 0x4 - core index']
  #allocation1 [shape = 'u32[72,128]{1,0:T(1,128)}', space=vmem, size = 0x9000, scoped, tag = 'internal scratch']
  #allocation2 [shape = 'f32[1,1]{1,0:T(1,128)S(1)}', space=vmem, size = 0x200, scoped, tag = 'scoped memory for critic_forward.1']
  %s0 = inlined_call_operand.vmem [shape: f32[8,3], index: 0, kind: input, shape index: {}]
  %s1 = inlined_call_operand.vmem [shape: f32[8,1], index: 1, kind: input, shape index: {}]
  %s2 = inlined_call_operand.vmem [shape: f32[3,512], index: 2, kind: input, shape index: {}]
  %s3 = inlined_call_operand.hbm [shape: f32[1,512], index: 3, kind: input, shape index: {}]
  %s4 = inlined_call_operand.vmem [shape: f32[1,512], index: 4, kind: input, shape index: {}]
  %s5 = inlined_call_operand.hbm [shape: bf16[512,384], index: 5, kind: input, shape index: {}]
  %s6 = inlined_call_operand.vmem [shape: f32[1,384], index: 6, kind: input, shape index: {}]
  %s7 = inlined_call_operand.vmem [shape: f32[1,384], index: 7, kind: input, shape index: {}]
  %s8 = inlined_call_operand.<no memory space> [shape: f32[1,1], index: 8, kind: input, shape index: {}]
  %s9 = inlined_call_operand.vmem [shape: f32[8,1], index: 9, kind: output, shape index: {}]
  %s10 = sld [smem:[#allocation0]]
  $region54: #{critic_forward.1} parent=0
    _
  %s12 = ssub.s32 1, %s10
  %s13 = scalar_select 0, %s12, %s10
  %v14 = vstv %s8
  %15 = vst [vmem:[#allocation2] sm:$0x1] %v14
  $region1: #{critic_forward.1} parent=0
    #allocation3 [shape = 'u8[2048]{0}', space=vmem, size = 0x800, scoped, tag = 'input window, operand 3, single buffered']
    #allocation4 [shape = 's32[1]{0}', space=sflag, size = 0x4, scoped, tag = 'scoped memory for critic_forward.1']
    #allocation5 [shape = 'u8[393216]{0}', space=vmem, size = 0x60000, scoped, tag = 'input window, operand 5, single buffered']
    #allocation6 [shape = 's32[1]{0}', space=sflag, size = 0x4, scoped, tag = 'scoped memory for critic_forward.1']
    %16 = vsyncpa [#allocation4], 0
    %17 = vsyncpa [#allocation6], 0
    // Predicated region
    $region2: #{critic_forward.1} parent=1 // pred_check
      _
    $region3: #{critic_forward.1} parent=1 // pred_check_branch
      %19 = sbr.rel (0) target = $region5
    $region4: #{critic_forward.1} parent=1 // pred_region
      _
    $region5: #{critic_forward.1} parent=1 // pred_fallthru
      _
    // Predicated region
    $region6: #{critic_forward.1} parent=1 // pred_check
      _
    $region7: #{critic_forward.1} parent=1 // pred_check_branch
      %21 = sbr.rel (0) target = $region9
    $region8: #{critic_forward.1} parent=1 // pred_region
      _
    $region9: #{critic_forward.1} parent=1 // pred_fallthru
      _
    // Predicated region
    $region10: #{critic_forward.1} parent=1 // pred_check
      _
    $region11: #{critic_forward.1} parent=1 // pred_check_branch
      %23 = sbr.rel (0) target = $region13
    $region12: #{critic_forward.1} parent=1 // pred_region
      _
    $region13: #{critic_forward.1} parent=1 // pred_fallthru
      _
    // Predicated region
    $region14: #{critic_forward.1} parent=1 // pred_check
      _
    $region15: #{critic_forward.1} parent=1 // pred_check_branch
      %25 = sbr.rel (0) target = $region17
    $region16: #{critic_forward.1} parent=1 // pred_region
      %27 = vsyncadd [#allocation4], 0
      %s29 = sshll.u32 %s3, 4
      %s30 = int_to_ptr.hbm [resolvable:$true] %s29
      %s31 = sshll.u32 [#allocation3], 4
      %s32 = int_to_ptr.vmem [resolvable:$true] %s31
      %34 = dma.hbm_to_vmem [thread:$0]  %s30, 64, %s32, [#allocation4]
    $region17: #{critic_forward.1} parent=1 // pred_fallthru
      _
    // Predicated region
    $region18: #{critic_forward.1} parent=1 // pred_check
      _
    $region19: #{critic_forward.1} parent=1 // pred_check_branch
      %36 = sbr.rel (0) target = $region21
    $region20: #{critic_forward.1} parent=1 // pred_region
      _
    $region21: #{critic_forward.1} parent=1 // pred_fallthru
      _
    // Predicated region
    $region22: #{critic_forward.1} parent=1 // pred_check
      _
    $region23: #{critic_forward.1} parent=1 // pred_check_branch
      %38 = sbr.rel (0) target = $region25
    $region24: #{critic_forward.1} parent=1 // pred_region
      %40 = vsyncadd [#allocation6], 0
      %s41 = sshll.u32 %s5, 4
      %s42 = int_to_ptr.hbm [resolvable:$true] %s41
      %s43 = sshll.u32 [#allocation5], 4
      %s44 = int_to_ptr.vmem [resolvable:$true] %s43
      %49 = dma.hbm_to_vmem [thread:$0]  %s42, 12288, %s44, [#allocation6], 192, 192, 12
    $region25: #{critic_forward.1} parent=1 // pred_fallthru
      _
    // Predicated region
    $region26: #{critic_forward.1} parent=1 // pred_check
      _
    $region27: #{critic_forward.1} parent=1 // pred_check_branch
      %51 = sbr.rel (0) target = $region29
    $region28: #{critic_forward.1} parent=1 // pred_region
      _
    $region29: #{critic_forward.1} parent=1 // pred_fallthru
      _
    // Predicated region
    $region30: #{critic_forward.1} parent=1 // pred_check
      _
    $region31: #{critic_forward.1} parent=1 // pred_check_branch
      %53 = sbr.rel (0) target = $region33
    $region32: #{critic_forward.1} parent=1 // pred_region
      _
    $region33: #{critic_forward.1} parent=1 // pred_fallthru
      _
    // Predicated region
    $region34: #{critic_forward.1} parent=1 // pred_check
      _
    $region35: #{critic_forward.1} parent=1 // pred_check_branch
      %55 = sbr.rel (0) target = $region37
    $region36: #{critic_forward.1} parent=1 // pred_region
      _
    $region37: #{critic_forward.1} parent=1 // pred_fallthru
      _
    // Predicated region
    $region38: #{critic_forward.1} parent=1 // pred_check
      _
    $region39: #{critic_forward.1} parent=1 // pred_check_branch
      %57 = sbr.rel (0) target = $region41
    $region40: #{critic_forward.1} parent=1 // pred_region
      %59 = dma.done [#allocation4], 64
    $region41: #{critic_forward.1} parent=1 // pred_fallthru
      _
    // Predicated region
    $region42: #{critic_forward.1} parent=1 // pred_check
      _
    $region43: #{critic_forward.1} parent=1 // pred_check_branch
      %61 = sbr.rel (0) target = $region45
    $region44: #{critic_forward.1} parent=1 // pred_region
      %63 = dma.done [#allocation6], 12288
    $region45: #{critic_forward.1} parent=1 // pred_fallthru
      _
    %v64 = vld [vmem:[%s0] sm:$0xff]
    %v65 = vld [vmem:[%s1] sm:$0xff]
    %v66 = vld [vmem:[%s4] sm:$0xf]
    %v68 = vperm.slane %v66, 0
    %v69 = vperm.slane %v66, 1
    %v70 = vperm.slane %v66, 2
    %v71 = vperm.slane %v66, 3
    %v76 = vld [vmem:[%s2] ss:$4 sm:$0xf]
    %78 = vset.pattern.permute.xlu0 0
    %79 = vperm.xlu0 %78, %v64
    %v80 = vpop.permute.xlu0 %79
    %v83 = vperm.slane %v76, 0
    %v84 = vperm.slane %v76, 1
    %v85 = vperm.slane %v76, 2
    %v86 = vperm.slane %v76, 3
    %v91 = vmul.f32 %v80, %v83
    %v92 = vmul.f32 %v80, %v84
    %v93 = vmul.f32 %v80, %v85
    %v94 = vmul.f32 %v80, %v86
    %v95 = vadd.f32 %v68, %v91
    %v96 = vadd.f32 %v69, %v92
    %v97 = vadd.f32 %v70, %v93
    %v98 = vadd.f32 %v71, %v94
    %s99 = scalar_lea.vmem %s2, 1
    %v100 = vld [vmem:[%s99] ss:$4 sm:$0xf]
    %101 = vset.pattern.permute.xlu0 1
    %102 = vperm.xlu0 %101, %v64
    %v103 = vpop.permute.xlu0 %102
    %v106 = vperm.slane %v100, 0
    %v107 = vperm.slane %v100, 1
    %v108 = vperm.slane %v100, 2
    %v109 = vperm.slane %v100, 3
    %v114 = vmul.f32 %v103, %v106
    %v115 = vmul.f32 %v103, %v107
    %v116 = vmul.f32 %v103, %v108
    %v117 = vmul.f32 %v103, %v109
    %v118 = vadd.f32 %v95, %v114
    %v119 = vadd.f32 %v96, %v115
    %v120 = vadd.f32 %v97, %v116
    %v121 = vadd.f32 %v98, %v117
    %s122 = scalar_lea.vmem %s2, 2
    %v123 = vld [vmem:[%s122] ss:$4 sm:$0xf]
    %124 = vset.pattern.permute.xlu0 2
    %125 = vperm.xlu0 %124, %v64
    %v126 = vpop.permute.xlu0 %125
    %v129 = vperm.slane %v123, 0
    %v130 = vperm.slane %v123, 1
    %v131 = vperm.slane %v123, 2
    %v132 = vperm.slane %v123, 3
    %v137 = vmul.f32 %v126, %v129
    %v138 = vmul.f32 %v126, %v130
    %v139 = vmul.f32 %v126, %v131
    %v140 = vmul.f32 %v126, %v132
    %v141 = vadd.f32 %v118, %v137
    %v142 = vadd.f32 %v119, %v138
    %v143 = vadd.f32 %v120, %v139
    %v144 = vadd.f32 %v121, %v140
    %v145 = vld [vmem:[#allocation3] sm:$0xf]
    %147 = vset.pattern.permute.xlu0 0
    %148 = vperm.xlu0 %147, %v65
    %v149 = vpop.permute.xlu0 %148
    %v152 = vperm.slane %v145, 0
    %v153 = vperm.slane %v145, 1
    %v154 = vperm.slane %v145, 2
    %v155 = vperm.slane %v145, 3
    %v160 = vmul.f32 %v149, %v152
    %v161 = vmul.f32 %v149, %v153
    %v162 = vmul.f32 %v149, %v154
    %v163 = vmul.f32 %v149, %v155
    %v164 = vadd.f32 %v141, %v160
    %v165 = vadd.f32 %v142, %v161
    %v166 = vadd.f32 %v143, %v162
    %v167 = vadd.f32 %v144, %v163
    %v168 = vmax.f32 %v164, 0.0
    %v169 = vmax.f32 %v165, 0.0
    %v170 = vmax.f32 %v166, 0.0
    %v171 = vmax.f32 %v167, 0.0
    %v172 = vpack.c.bf16 %v168, %v168
    %v173 = vpack.c.bf16 %v169, %v169
    %v174 = vpack.c.bf16 %v170, %v170
    %v175 = vpack.c.bf16 %v171, %v171
    %v176 = vld [vmem:[#allocation5] sm:$0xff]
    %v177 = vld [vmem:[#allocation5 + $0x8] sm:$0xf]
    %v178 = vld [vmem:[#allocation5 + $0xc] sm:$0xff]
    %v179 = vld [vmem:[#allocation5 + $0x14] sm:$0xf]
    %v180 = vld [vmem:[#allocation5 + $0x18] sm:$0xff]
    %v181 = vld [vmem:[#allocation5 + $0x20] sm:$0xf]
    %v182 = vld [vmem:[#allocation5 + $0x24] sm:$0xff]
    %v183 = vld [vmem:[#allocation5 + $0x2c] sm:$0xf]
    %v184 = vld [vmem:[#allocation5 + $0x30] sm:$0xff]
    %v185 = vld [vmem:[#allocation5 + $0x38] sm:$0xf]
    %v186 = vld [vmem:[#allocation5 + $0x3c] sm:$0xff]
    %v187 = vld [vmem:[#allocation5 + $0x44] sm:$0xf]
    %v188 = vld [vmem:[#allocation5 + $0x48] sm:$0xff]
    %v189 = vld [vmem:[#allocation5 + $0x50] sm:$0xf]
    %v190 = vld [vmem:[#allocation5 + $0x54] sm:$0xff]
    %v191 = vld [vmem:[#allocation5 + $0x5c] sm:$0xf]
    %v192 = vld [vmem:[#allocation5 + $0x60] sm:$0xff]
    %v193 = vld [vmem:[#allocation5 + $0x68] sm:$0xf]
    %v194 = vld [vmem:[#allocation5 + $0x6c] sm:$0xff]
    %v195 = vld [vmem:[#allocation5 + $0x74] sm:$0xf]
    %v196 = vld [vmem:[#allocation5 + $0x78] sm:$0xff]
    %v197 = vld [vmem:[#allocation5 + $0x80] sm:$0xf]
    %v198 = vld [vmem:[#allocation5 + $0x84] sm:$0xff]
    %v199 = vld [vmem:[#allocation5 + $0x8c] sm:$0xf]
    %v200 = vld [vmem:[#allocation5 + $0x90] sm:$0xff]
    %v201 = vld [vmem:[#allocation5 + $0x98] sm:$0xf]
    %v202 = vld [vmem:[#allocation5 + $0x9c] sm:$0xff]
    %v203 = vld [vmem:[#allocation5 + $0xa4] sm:$0xf]
    %v204 = vld [vmem:[#allocation5 + $0xa8] sm:$0xff]
    %v205 = vld [vmem:[#allocation5 + $0xb0] sm:$0xf]
    %v206 = vld [vmem:[#allocation5 + $0xb4] sm:$0xff]
    %v207 = vld [vmem:[#allocation5 + $0xbc] sm:$0xf]
    %v208 = vld [vmem:[#allocation5 + $0xc0] sm:$0xff]
    %v209 = vld [vmem:[#allocation5 + $0xc8] sm:$0xf]
    %v210 = vld [vmem:[#allocation5 + $0xcc] sm:$0xff]
    %v211 = vld [vmem:[#allocation5 + $0xd4] sm:$0xf]
    %v212 = vld [vmem:[#allocation5 + $0xd8] sm:$0xff]
    %v213 = vld [vmem:[#allocation5 + $0xe0] sm:$0xf]
    %v214 = vld [vmem:[#allocation5 + $0xe4] sm:$0xff]
    %v215 = vld [vmem:[#allocation5 + $0xec] sm:$0xf]
    %v216 = vld [vmem:[#allocation5 + $0xf0] sm:$0xff]
    %v217 = vld [vmem:[#allocation5 + $0xf8] sm:$0xf]
    %v218 = vld [vmem:[#allocation5 + $0xfc] sm:$0xff]
    %v219 = vld [vmem:[#allocation5 + $0x104] sm:$0xf]
    %v220 = vld [vmem:[#allocation5 + $0x108] sm:$0xff]
    %v221 = vld [vmem:[#allocation5 + $0x110] sm:$0xf]
    %v222 = vld [vmem:[#allocation5 + $0x114] sm:$0xff]
    %v223 = vld [vmem:[#allocation5 + $0x11c] sm:$0xf]
    %v224 = vld [vmem:[#allocation5 + $0x120] sm:$0xff]
    %v225 = vld [vmem:[#allocation5 + $0x128] sm:$0xf]
    %v226 = vld [vmem:[#allocation5 + $0x12c] sm:$0xff]
    %v227 = vld [vmem:[#allocation5 + $0x134] sm:$0xf]
    %v228 = vld [vmem:[#allocation5 + $0x138] sm:$0xff]
    %v229 = vld [vmem:[#allocation5 + $0x140] sm:$0xf]
    %v230 = vld [vmem:[#allocation5 + $0x144] sm:$0xff]
    %v231 = vld [vmem:[#allocation5 + $0x14c] sm:$0xf]
    %v232 = vld [vmem:[#allocation5 + $0x150] sm:$0xff]
    %v233 = vld [vmem:[#allocation5 + $0x158] sm:$0xf]
    %v234 = vld [vmem:[#allocation5 + $0x15c] sm:$0xff]
    %v235 = vld [vmem:[#allocation5 + $0x164] sm:$0xf]
    %v236 = vld [vmem:[#allocation5 + $0x168] sm:$0xff]
    %v237 = vld [vmem:[#allocation5 + $0x170] sm:$0xf]
    %v238 = vld [vmem:[#allocation5 + $0x174] sm:$0xff]
    %v239 = vld [vmem:[#allocation5 + $0x17c] sm:$0xf]
    %v240 = vld [vmem:[#allocation5 + $0x180] sm:$0xff]
    %v241 = vld [vmem:[#allocation5 + $0x188] sm:$0xf]
    %v242 = vld [vmem:[#allocation5 + $0x18c] sm:$0xff]
    %v243 = vld [vmem:[#allocation5 + $0x194] sm:$0xf]
    %v244 = vld [vmem:[#allocation5 + $0x198] sm:$0xff]
    %v245 = vld [vmem:[#allocation5 + $0x1a0] sm:$0xf]
    %v246 = vld [vmem:[#allocation5 + $0x1a4] sm:$0xff]
    %v247 = vld [vmem:[#allocation5 + $0x1ac] sm:$0xf]
    %v248 = vld [vmem:[#allocation5 + $0x1b0] sm:$0xff]
    %v249 = vld [vmem:[#allocation5 + $0x1b8] sm:$0xf]
    %v250 = vld [vmem:[#allocation5 + $0x1bc] sm:$0xff]
    %v251 = vld [vmem:[#allocation5 + $0x1c4] sm:$0xf]
    %v252 = vld [vmem:[#allocation5 + $0x1c8] sm:$0xff]
    %v253 = vld [vmem:[#allocation5 + $0x1d0] sm:$0xf]
    %v254 = vld [vmem:[#allocation5 + $0x1d4] sm:$0xff]
    %v255 = vld [vmem:[#allocation5 + $0x1dc] sm:$0xf]
    %v256 = vld [vmem:[#allocation5 + $0x1e0] sm:$0xff]
    %v257 = vld [vmem:[#allocation5 + $0x1e8] sm:$0xf]
    %v258 = vld [vmem:[#allocation5 + $0x1ec] sm:$0xff]
    %v259 = vld [vmem:[#allocation5 + $0x1f4] sm:$0xf]
    %v260 = vld [vmem:[#allocation5 + $0x1f8] sm:$0xff]
    %v261 = vld [vmem:[#allocation5 + $0x200] sm:$0xf]
    %v262 = vld [vmem:[#allocation5 + $0x204] sm:$0xff]
    %v263 = vld [vmem:[#allocation5 + $0x20c] sm:$0xf]
    %v264 = vld [vmem:[#allocation5 + $0x210] sm:$0xff]
    %v265 = vld [vmem:[#allocation5 + $0x218] sm:$0xf]
    %v266 = vld [vmem:[#allocation5 + $0x21c] sm:$0xff]
    %v267 = vld [vmem:[#allocation5 + $0x224] sm:$0xf]
    %v268 = vld [vmem:[#allocation5 + $0x228] sm:$0xff]
    %v269 = vld [vmem:[#allocation5 + $0x230] sm:$0xf]
    %v270 = vld [vmem:[#allocation5 + $0x234] sm:$0xff]
    %v271 = vld [vmem:[#allocation5 + $0x23c] sm:$0xf]
    %v272 = vld [vmem:[#allocation5 + $0x240] sm:$0xff]
    %v273 = vld [vmem:[#allocation5 + $0x248] sm:$0xf]
    %v274 = vld [vmem:[#allocation5 + $0x24c] sm:$0xff]
    %v275 = vld [vmem:[#allocation5 + $0x254] sm:$0xf]
    %v276 = vld [vmem:[#allocation5 + $0x258] sm:$0xff]
    %v277 = vld [vmem:[#allocation5 + $0x260] sm:$0xf]
    %v278 = vld [vmem:[#allocation5 + $0x264] sm:$0xff]
    %v279 = vld [vmem:[#allocation5 + $0x26c] sm:$0xf]
    %v280 = vld [vmem:[#allocation5 + $0x270] sm:$0xff]
    %v281 = vld [vmem:[#allocation5 + $0x278] sm:$0xf]
    %v282 = vld [vmem:[#allocation5 + $0x27c] sm:$0xff]
    %v283 = vld [vmem:[#allocation5 + $0x284] sm:$0xf]
    %v284 = vld [vmem:[#allocation5 + $0x288] sm:$0xff]
    %v285 = vld [vmem:[#allocation5 + $0x290] sm:$0xf]
    %v286 = vld [vmem:[#allocation5 + $0x294] sm:$0xff]
    %v287 = vld [vmem:[#allocation5 + $0x29c] sm:$0xf]
    %v288 = vld [vmem:[#allocation5 + $0x2a0] sm:$0xff]
    %v289 = vld [vmem:[#allocation5 + $0x2a8] sm:$0xf]
    %v290 = vld [vmem:[#allocation5 + $0x2ac] sm:$0xff]
    %v291 = vld [vmem:[#allocation5 + $0x2b4] sm:$0xf]
    %v292 = vld [vmem:[#allocation5 + $0x2b8] sm:$0xff]
    %v293 = vld [vmem:[#allocation5 + $0x2c0] sm:$0xf]
    %v294 = vld [vmem:[#allocation5 + $0x2c4] sm:$0xff]
    %v295 = vld [vmem:[#allocation5 + $0x2cc] sm:$0xf]
    %v296 = vld [vmem:[#allocation5 + $0x2d0] sm:$0xff]
    %v297 = vld [vmem:[#allocation5 + $0x2d8] sm:$0xf]
    %v298 = vld [vmem:[#allocation5 + $0x2dc] sm:$0xff]
    %v299 = vld [vmem:[#allocation5 + $0x2e4] sm:$0xf]
    %v300 = vld [vmem:[#allocation5 + $0x2e8] sm:$0xff]
    %v301 = vld [vmem:[#allocation5 + $0x2f0] sm:$0xf]
    %v302 = vld [vmem:[#allocation5 + $0x2f4] sm:$0xff]
    %v303 = vld [vmem:[#allocation5 + $0x2fc] sm:$0xf]
    %v304 = vld [vmem:[%s6] sm:$0x7]
    %v306 = vperm.slane %v304, 0
    %v307 = vperm.slane %v304, 1
    %v308 = vperm.slane %v304, 2
    %v440 = vunpack.c.l.b16 %v176
    %v441 = vunpack.c.h.b16 %v176
    %v442 = vunpack.c.l.b16 %v177
    %v443 = vunpack.c.l.b16 %v178
    %v444 = vunpack.c.h.b16 %v178
    %v445 = vunpack.c.l.b16 %v179
    %v446 = vunpack.c.l.b16 %v180
    %v447 = vunpack.c.h.b16 %v180
    %v448 = vunpack.c.l.b16 %v181
    %v449 = vunpack.c.l.b16 %v182
    %v450 = vunpack.c.h.b16 %v182
    %v451 = vunpack.c.l.b16 %v183
    %v452 = vunpack.c.l.b16 %v184
    %v453 = vunpack.c.h.b16 %v184
    %v454 = vunpack.c.l.b16 %v185
    %v455 = vunpack.c.l.b16 %v186
    %v456 = vunpack.c.h.b16 %v186
    %v457 = vunpack.c.l.b16 %v187
    %v458 = vunpack.c.l.b16 %v188
    %v459 = vunpack.c.h.b16 %v188
    %v460 = vunpack.c.l.b16 %v189
    %v461 = vunpack.c.l.b16 %v190
    %v462 = vunpack.c.h.b16 %v190
    %v463 = vunpack.c.l.b16 %v191
    %v464 = vunpack.c.l.b16 %v192
    %v465 = vunpack.c.h.b16 %v192
    %v466 = vunpack.c.l.b16 %v193
    %v467 = vunpack.c.l.b16 %v194
    %v468 = vunpack.c.h.b16 %v194
    %v469 = vunpack.c.l.b16 %v195
    %v470 = vunpack.c.l.b16 %v196
    %v471 = vunpack.c.h.b16 %v196
    %v472 = vunpack.c.l.b16 %v197
    %v473 = vunpack.c.l.b16 %v198
    %v474 = vunpack.c.h.b16 %v198
    %v475 = vunpack.c.l.b16 %v199
    %v476 = vunpack.c.l.b16 %v200
    %v477 = vunpack.c.h.b16 %v200
    %v478 = vunpack.c.l.b16 %v201
    %v479 = vunpack.c.l.b16 %v202
    %v480 = vunpack.c.h.b16 %v202
    %v481 = vunpack.c.l.b16 %v203
    %v482 = vunpack.c.l.b16 %v204
    %v483 = vunpack.c.h.b16 %v204
    %v484 = vunpack.c.l.b16 %v205
    %v485 = vunpack.c.l.b16 %v206
    %v486 = vunpack.c.h.b16 %v206
    %v487 = vunpack.c.l.b16 %v207
    %v488 = vunpack.c.l.b16 %v208
    %v489 = vunpack.c.h.b16 %v208
    %v490 = vunpack.c.l.b16 %v209
    %v491 = vunpack.c.l.b16 %v210
    %v492 = vunpack.c.h.b16 %v210
    %v493 = vunpack.c.l.b16 %v211
    %v494 = vunpack.c.l.b16 %v212
    %v495 = vunpack.c.h.b16 %v212
    %v496 = vunpack.c.l.b16 %v213
    %v497 = vunpack.c.l.b16 %v214
    %v498 = vunpack.c.h.b16 %v214
    %v499 = vunpack.c.l.b16 %v215
    %v500 = vunpack.c.l.b16 %v216
    %v501 = vunpack.c.h.b16 %v216
    %v502 = vunpack.c.l.b16 %v217
    %v503 = vunpack.c.l.b16 %v218
    %v504 = vunpack.c.h.b16 %v218
    %v505 = vunpack.c.l.b16 %v219
    %v506 = vunpack.c.l.b16 %v220
    %v507 = vunpack.c.h.b16 %v220
    %v508 = vunpack.c.l.b16 %v221
    %v509 = vunpack.c.l.b16 %v222
    %v510 = vunpack.c.h.b16 %v222
    %v511 = vunpack.c.l.b16 %v223
    %v512 = vunpack.c.l.b16 %v224
    %v513 = vunpack.c.h.b16 %v224
    %v514 = vunpack.c.l.b16 %v225
    %v515 = vunpack.c.l.b16 %v226
    %v516 = vunpack.c.h.b16 %v226
    %v517 = vunpack.c.l.b16 %v227
    %v518 = vunpack.c.l.b16 %v228
    %v519 = vunpack.c.h.b16 %v228
    %v520 = vunpack.c.l.b16 %v229
    %v521 = vunpack.c.l.b16 %v230
    %v522 = vunpack.c.h.b16 %v230
    %v523 = vunpack.c.l.b16 %v231
    %v524 = vunpack.c.l.b16 %v232
    %v525 = vunpack.c.h.b16 %v232
    %v526 = vunpack.c.l.b16 %v233
    %v527 = vunpack.c.l.b16 %v234
    %v528 = vunpack.c.h.b16 %v234
    %v529 = vunpack.c.l.b16 %v235
    %v530 = vunpack.c.l.b16 %v236
    %v531 = vunpack.c.h.b16 %v236
    %v532 = vunpack.c.l.b16 %v237
    %v533 = vunpack.c.l.b16 %v238
    %v534 = vunpack.c.h.b16 %v238
    %v535 = vunpack.c.l.b16 %v239
    %v536 = vunpack.c.l.b16 %v240
    %v537 = vunpack.c.h.b16 %v240
    %v538 = vunpack.c.l.b16 %v241
    %v539 = vunpack.c.l.b16 %v242
    %v540 = vunpack.c.h.b16 %v242
    %v541 = vunpack.c.l.b16 %v243
    %v542 = vunpack.c.l.b16 %v244
    %v543 = vunpack.c.h.b16 %v244
    %v544 = vunpack.c.l.b16 %v245
    %v545 = vunpack.c.l.b16 %v246
    %v546 = vunpack.c.h.b16 %v246
    %v547 = vunpack.c.l.b16 %v247
    %v548 = vunpack.c.l.b16 %v248
    %v549 = vunpack.c.h.b16 %v248
    %v550 = vunpack.c.l.b16 %v249
    %v551 = vunpack.c.l.b16 %v250
    %v552 = vunpack.c.h.b16 %v250
    %v553 = vunpack.c.l.b16 %v251
    %v554 = vunpack.c.l.b16 %v252
    %v555 = vunpack.c.h.b16 %v252
    %v556 = vunpack.c.l.b16 %v253
    %v557 = vunpack.c.l.b16 %v254
    %v558 = vunpack.c.h.b16 %v254
    %v559 = vunpack.c.l.b16 %v255
    %v560 = vunpack.c.l.b16 %v256
    %v561 = vunpack.c.h.b16 %v256
    %v562 = vunpack.c.l.b16 %v257
    %v563 = vunpack.c.l.b16 %v258
    %v564 = vunpack.c.h.b16 %v258
    %v565 = vunpack.c.l.b16 %v259
    %v566 = vunpack.c.l.b16 %v260
    %v567 = vunpack.c.h.b16 %v260
    %v568 = vunpack.c.l.b16 %v261
    %v569 = vunpack.c.l.b16 %v262
    %v570 = vunpack.c.h.b16 %v262
    %v571 = vunpack.c.l.b16 %v263
    %v572 = vunpack.c.l.b16 %v264
    %v573 = vunpack.c.h.b16 %v264
    %v574 = vunpack.c.l.b16 %v265
    %v575 = vunpack.c.l.b16 %v266
    %v576 = vunpack.c.h.b16 %v266
    %v577 = vunpack.c.l.b16 %v267
    %v578 = vunpack.c.l.b16 %v268
    %v579 = vunpack.c.h.b16 %v268
    %v580 = vunpack.c.l.b16 %v269
    %v581 = vunpack.c.l.b16 %v270
    %v582 = vunpack.c.h.b16 %v270
    %v583 = vunpack.c.l.b16 %v271
    %v584 = vunpack.c.l.b16 %v272
    %v585 = vunpack.c.h.b16 %v272
    %v586 = vunpack.c.l.b16 %v273
    %v587 = vunpack.c.l.b16 %v274
    %v588 = vunpack.c.h.b16 %v274
    %v589 = vunpack.c.l.b16 %v275
    %v590 = vunpack.c.l.b16 %v276
    %v591 = vunpack.c.h.b16 %v276
    %v592 = vunpack.c.l.b16 %v277
    %v593 = vunpack.c.l.b16 %v278
    %v594 = vunpack.c.h.b16 %v278
    %v595 = vunpack.c.l.b16 %v279
    %v596 = vunpack.c.l.b16 %v280
    %v597 = vunpack.c.h.b16 %v280
    %v598 = vunpack.c.l.b16 %v281
    %v599 = vunpack.c.l.b16 %v282
    %v600 = vunpack.c.h.b16 %v282
    %v601 = vunpack.c.l.b16 %v283
    %v602 = vunpack.c.l.b16 %v284
    %v603 = vunpack.c.h.b16 %v284
    %v604 = vunpack.c.l.b16 %v285
    %v605 = vunpack.c.l.b16 %v286
    %v606 = vunpack.c.h.b16 %v286
    %v607 = vunpack.c.l.b16 %v287
    %v608 = vunpack.c.l.b16 %v288
    %v609 = vunpack.c.h.b16 %v288
    %v610 = vunpack.c.l.b16 %v289
    %v611 = vunpack.c.l.b16 %v290
    %v612 = vunpack.c.h.b16 %v290
    %v613 = vunpack.c.l.b16 %v291
    %v614 = vunpack.c.l.b16 %v292
    %v615 = vunpack.c.h.b16 %v292
    %v616 = vunpack.c.l.b16 %v293
    %v617 = vunpack.c.l.b16 %v294
    %v618 = vunpack.c.h.b16 %v294
    %v619 = vunpack.c.l.b16 %v295
    %v620 = vunpack.c.l.b16 %v296
    %v621 = vunpack.c.h.b16 %v296
    %v622 = vunpack.c.l.b16 %v297
    %v623 = vunpack.c.l.b16 %v298
    %v624 = vunpack.c.h.b16 %v298
    %v625 = vunpack.c.l.b16 %v299
    %v626 = vunpack.c.l.b16 %v300
    %v627 = vunpack.c.h.b16 %v300
    %v628 = vunpack.c.l.b16 %v301
    %v629 = vunpack.c.l.b16 %v302
    %v630 = vunpack.c.h.b16 %v302
    %v631 = vunpack.c.l.b16 %v303
    %v632 = vpack.c.b16 %v443, %v440
    %v633 = vpack.c.b16 %v444, %v441
    %v634 = vpack.c.b16 %v445, %v442
    %v635 = vpack.c.b16 %v449, %v446
    %v636 = vpack.c.b16 %v450, %v447
    %v637 = vpack.c.b16 %v451, %v448
    %v638 = vpack.c.b16 %v455, %v452
    %v639 = vpack.c.b16 %v456, %v453
    %v640 = vpack.c.b16 %v457, %v454
    %v641 = vpack.c.b16 %v461, %v458
    %v642 = vpack.c.b16 %v462, %v459
    %v643 = vpack.c.b16 %v463, %v460
    %v644 = vpack.c.b16 %v467, %v464
    %v645 = vpack.c.b16 %v468, %v465
    %v646 = vpack.c.b16 %v469, %v466
    %v647 = vpack.c.b16 %v473, %v470
    %v648 = vpack.c.b16 %v474, %v471
    %v649 = vpack.c.b16 %v475, %v472
    %v650 = vpack.c.b16 %v479, %v476
    %v651 = vpack.c.b16 %v480, %v477
    %v652 = vpack.c.b16 %v481, %v478
    %v653 = vpack.c.b16 %v485, %v482
    %v654 = vpack.c.b16 %v486, %v483
    %v655 = vpack.c.b16 %v487, %v484
    %v656 = vpack.c.b16 %v491, %v488
    %v657 = vpack.c.b16 %v492, %v489
    %v658 = vpack.c.b16 %v493, %v490
    %v659 = vpack.c.b16 %v497, %v494
    %v660 = vpack.c.b16 %v498, %v495
    %v661 = vpack.c.b16 %v499, %v496
    %v662 = vpack.c.b16 %v503, %v500
    %v663 = vpack.c.b16 %v504, %v501
    %v664 = vpack.c.b16 %v505, %v502
    %v665 = vpack.c.b16 %v509, %v506
    %v666 = vpack.c.b16 %v510, %v507
    %v667 = vpack.c.b16 %v511, %v508
    %v668 = vpack.c.b16 %v515, %v512
    %v669 = vpack.c.b16 %v516, %v513
    %v670 = vpack.c.b16 %v517, %v514
    %v671 = vpack.c.b16 %v521, %v518
    %v672 = vpack.c.b16 %v522, %v519
    %v673 = vpack.c.b16 %v523, %v520
    %v674 = vpack.c.b16 %v527, %v524
    %v675 = vpack.c.b16 %v528, %v525
    %v676 = vpack.c.b16 %v529, %v526
    %v677 = vpack.c.b16 %v533, %v530
    %v678 = vpack.c.b16 %v534, %v531
    %v679 = vpack.c.b16 %v535, %v532
    %v680 = vpack.c.b16 %v539, %v536
    %v681 = vpack.c.b16 %v540, %v537
    %v682 = vpack.c.b16 %v541, %v538
    %v683 = vpack.c.b16 %v545, %v542
    %v684 = vpack.c.b16 %v546, %v543
    %v685 = vpack.c.b16 %v547, %v544
    %v686 = vpack.c.b16 %v551, %v548
    %v687 = vpack.c.b16 %v552, %v549
    %v688 = vpack.c.b16 %v553, %v550
    %v689 = vpack.c.b16 %v557, %v554
    %v690 = vpack.c.b16 %v558, %v555
    %v691 = vpack.c.b16 %v559, %v556
    %v692 = vpack.c.b16 %v563, %v560
    %v693 = vpack.c.b16 %v564, %v561
    %v694 = vpack.c.b16 %v565, %v562
    %v695 = vpack.c.b16 %v569, %v566
    %v696 = vpack.c.b16 %v570, %v567
    %v697 = vpack.c.b16 %v571, %v568
    %v698 = vpack.c.b16 %v575, %v572
    %v699 = vpack.c.b16 %v576, %v573
    %v700 = vpack.c.b16 %v577, %v574
    %v701 = vpack.c.b16 %v581, %v578
    %v702 = vpack.c.b16 %v582, %v579
    %v703 = vpack.c.b16 %v583, %v580
    %v704 = vpack.c.b16 %v587, %v584
    %v705 = vpack.c.b16 %v588, %v585
    %v706 = vpack.c.b16 %v589, %v586
    %v707 = vpack.c.b16 %v593, %v590
    %v708 = vpack.c.b16 %v594, %v591
    %v709 = vpack.c.b16 %v595, %v592
    %v710 = vpack.c.b16 %v599, %v596
    %v711 = vpack.c.b16 %v600, %v597
    %v712 = vpack.c.b16 %v601, %v598
    %v713 = vpack.c.b16 %v605, %v602
    %v714 = vpack.c.b16 %v606, %v603
    %v715 = vpack.c.b16 %v607, %v604
    %v716 = vpack.c.b16 %v611, %v608
    %v717 = vpack.c.b16 %v612, %v609
    %v718 = vpack.c.b16 %v613, %v610
    %v719 = vpack.c.b16 %v617, %v614
    %v720 = vpack.c.b16 %v618, %v615
    %v721 = vpack.c.b16 %v619, %v616
    %v722 = vpack.c.b16 %v623, %v620
    %v723 = vpack.c.b16 %v624, %v621
    %v724 = vpack.c.b16 %v625, %v622
    %v725 = vpack.c.b16 %v629, %v626
    %v726 = vpack.c.b16 %v630, %v627
    %v727 = vpack.c.b16 %v631, %v628
    %824 = vmatpush.bf16.msra.mxu0 %v653
    %825 = vmatpush.bf16.msra.mxu0 %v650
    %826 = vmatpush.bf16.msra.mxu0 %v647
    %827 = vmatpush.bf16.msra.mxu0 %v644
    %828 = vmatpush.bf16.msra.mxu0 %v641
    %829 = vmatpush.bf16.msra.mxu0 %v638
    %830 = vmatpush.bf16.msra.mxu0 %v635
    %831 = vmatpush.bf16.msra.mxu0 %v632
    %832 = vmatmul.bf16.gmra.mxu0 %v172
    %v833 = vpop.f32.mrf.mxu0
    %v834 = vadd.f32 %v306, %v833
    %v835 = vpop.f32.mrf.mxu0
    %836 = vdwg.mxu0
    %837 = vmatpush.bf16.msra.mxu0 %v677
    %838 = vmatpush.bf16.msra.mxu0 %v674
    %839 = vmatpush.bf16.msra.mxu0 %v671
    %840 = vmatpush.bf16.msra.mxu0 %v668
    %841 = vmatpush.bf16.msra.mxu0 %v665
    %842 = vmatpush.bf16.msra.mxu0 %v662
    %843 = vmatpush.bf16.msra.mxu0 %v659
    %844 = vmatpush.bf16.msra.mxu0 %v656
    %845 = vmatmul.bf16.gmra.mxu0 %v173
    %v846 = vpop.f32.mrf.mxu0
    %v847 = vadd.f32 %v834, %v846
    %v848 = vpop.f32.mrf.mxu0
    %849 = vdwg.mxu0
    %850 = vmatpush.bf16.msra.mxu0 %v701
    %851 = vmatpush.bf16.msra.mxu0 %v698
    %852 = vmatpush.bf16.msra.mxu0 %v695
    %853 = vmatpush.bf16.msra.mxu0 %v692
    %854 = vmatpush.bf16.msra.mxu0 %v689
    %855 = vmatpush.bf16.msra.mxu0 %v686
    %856 = vmatpush.bf16.msra.mxu0 %v683
    %857 = vmatpush.bf16.msra.mxu0 %v680
    %858 = vmatmul.bf16.gmra.mxu0 %v174
    %v859 = vpop.f32.mrf.mxu0
    %v860 = vadd.f32 %v847, %v859
    %v861 = vpop.f32.mrf.mxu0
    %862 = vdwg.mxu0
    %863 = vmatpush.bf16.msra.mxu0 %v725
    %864 = vmatpush.bf16.msra.mxu0 %v722
    %865 = vmatpush.bf16.msra.mxu0 %v719
    %866 = vmatpush.bf16.msra.mxu0 %v716
    %867 = vmatpush.bf16.msra.mxu0 %v713
    %868 = vmatpush.bf16.msra.mxu0 %v710
    %869 = vmatpush.bf16.msra.mxu0 %v707
    %870 = vmatpush.bf16.msra.mxu0 %v704
    %871 = vmatmul.bf16.gmra.mxu0 %v175
    %v872 = vpop.f32.mrf.mxu0
    %v873 = vadd.f32 %v860, %v872
    %v874 = vpop.f32.mrf.mxu0
    %875 = vdwg.mxu0
    %876 = vmatpush.bf16.msra.mxu0 %v654
    %877 = vmatpush.bf16.msra.mxu0 %v651
    %878 = vmatpush.bf16.msra.mxu0 %v648
    %879 = vmatpush.bf16.msra.mxu0 %v645
    %880 = vmatpush.bf16.msra.mxu0 %v642
    %881 = vmatpush.bf16.msra.mxu0 %v639
    %882 = vmatpush.bf16.msra.mxu0 %v636
    %883 = vmatpush.bf16.msra.mxu0 %v633
    %884 = vmatmul.bf16.gmra.mxu0 %v172
    %v885 = vpop.f32.mrf.mxu0
    %v886 = vadd.f32 %v307, %v885
    %v887 = vpop.f32.mrf.mxu0
    %888 = vdwg.mxu0
    %889 = vmatpush.bf16.msra.mxu0 %v678
    %890 = vmatpush.bf16.msra.mxu0 %v675
    %891 = vmatpush.bf16.msra.mxu0 %v672
    %892 = vmatpush.bf16.msra.mxu0 %v669
    %893 = vmatpush.bf16.msra.mxu0 %v666
    %894 = vmatpush.bf16.msra.mxu0 %v663
    %895 = vmatpush.bf16.msra.mxu0 %v660
    %896 = vmatpush.bf16.msra.mxu0 %v657
    %897 = vmatmul.bf16.gmra.mxu0 %v173
    %v898 = vpop.f32.mrf.mxu0
    %v899 = vadd.f32 %v886, %v898
    %v900 = vpop.f32.mrf.mxu0
    %901 = vdwg.mxu0
    %902 = vmatpush.bf16.msra.mxu0 %v702
    %903 = vmatpush.bf16.msra.mxu0 %v699
    %904 = vmatpush.bf16.msra.mxu0 %v696
    %905 = vmatpush.bf16.msra.mxu0 %v693
    %906 = vmatpush.bf16.msra.mxu0 %v690
    %907 = vmatpush.bf16.msra.mxu0 %v687
    %908 = vmatpush.bf16.msra.mxu0 %v684
    %909 = vmatpush.bf16.msra.mxu0 %v681
    %910 = vmatmul.bf16.gmra.mxu0 %v174
    %v911 = vpop.f32.mrf.mxu0
    %v912 = vadd.f32 %v899, %v911
    %v913 = vpop.f32.mrf.mxu0
    %914 = vdwg.mxu0
    %915 = vmatpush.bf16.msra.mxu0 %v726
    %916 = vmatpush.bf16.msra.mxu0 %v723
    %917 = vmatpush.bf16.msra.mxu0 %v720
    %918 = vmatpush.bf16.msra.mxu0 %v717
    %919 = vmatpush.bf16.msra.mxu0 %v714
    %920 = vmatpush.bf16.msra.mxu0 %v711
    %921 = vmatpush.bf16.msra.mxu0 %v708
    %922 = vmatpush.bf16.msra.mxu0 %v705
    %923 = vmatmul.bf16.gmra.mxu0 %v175
    %v924 = vpop.f32.mrf.mxu0
    %v925 = vadd.f32 %v912, %v924
    %v926 = vpop.f32.mrf.mxu0
    %927 = vdwg.mxu0
    %928 = vmatpush.bf16.msra.mxu0 %v655
    %929 = vmatpush.bf16.msra.mxu0 %v652
    %930 = vmatpush.bf16.msra.mxu0 %v649
    %931 = vmatpush.bf16.msra.mxu0 %v646
    %932 = vmatpush.bf16.msra.mxu0 %v643
    %933 = vmatpush.bf16.msra.mxu0 %v640
    %934 = vmatpush.bf16.msra.mxu0 %v637
    %935 = vmatpush.bf16.msra.mxu0 %v634
    %936 = vmatmul.bf16.gmra.mxu0 %v172
    %v937 = vpop.f32.mrf.mxu0
    %v938 = vadd.f32 %v308, %v937
    %v939 = vpop.f32.mrf.mxu0
    %940 = vdwg.mxu0
    %941 = vmatpush.bf16.msra.mxu0 %v679
    %942 = vmatpush.bf16.msra.mxu0 %v676
    %943 = vmatpush.bf16.msra.mxu0 %v673
    %944 = vmatpush.bf16.msra.mxu0 %v670
    %945 = vmatpush.bf16.msra.mxu0 %v667
    %946 = vmatpush.bf16.msra.mxu0 %v664
    %947 = vmatpush.bf16.msra.mxu0 %v661
    %948 = vmatpush.bf16.msra.mxu0 %v658
    %949 = vmatmul.bf16.gmra.mxu0 %v173
    %v950 = vpop.f32.mrf.mxu0
    %v951 = vadd.f32 %v938, %v950
    %v952 = vpop.f32.mrf.mxu0
    %953 = vdwg.mxu0
    %954 = vmatpush.bf16.msra.mxu0 %v703
    %955 = vmatpush.bf16.msra.mxu0 %v700
    %956 = vmatpush.bf16.msra.mxu0 %v697
    %957 = vmatpush.bf16.msra.mxu0 %v694
    %958 = vmatpush.bf16.msra.mxu0 %v691
    %959 = vmatpush.bf16.msra.mxu0 %v688
    %960 = vmatpush.bf16.msra.mxu0 %v685
    %961 = vmatpush.bf16.msra.mxu0 %v682
    %962 = vmatmul.bf16.gmra.mxu0 %v174
    %v963 = vpop.f32.mrf.mxu0
    %v964 = vadd.f32 %v951, %v963
    %v965 = vpop.f32.mrf.mxu0
    %966 = vdwg.mxu0
    %967 = vmatpush.bf16.msra.mxu0 %v727
    %968 = vmatpush.bf16.msra.mxu0 %v724
    %969 = vmatpush.bf16.msra.mxu0 %v721
    %970 = vmatpush.bf16.msra.mxu0 %v718
    %971 = vmatpush.bf16.msra.mxu0 %v715
    %972 = vmatpush.bf16.msra.mxu0 %v712
    %973 = vmatpush.bf16.msra.mxu0 %v709
    %974 = vmatpush.bf16.msra.mxu0 %v706
    %975 = vmatmul.bf16.gmra.mxu0 %v175
    %v976 = vpop.f32.mrf.mxu0
    %v977 = vadd.f32 %v964, %v976
    %v978 = vpop.f32.mrf.mxu0
    %979 = vdwg.mxu0
    %v980 = vmax.f32 %v873, 0.0
    %v981 = vmax.f32 %v925, 0.0
    %v982 = vmax.f32 %v977, 0.0
    %v983 = vld [vmem:[%s7] sm:$0x7]
    %v985 = vperm.slane %v983, 0
    %v986 = vperm.slane %v983, 1
    %v987 = vperm.slane %v983, 2
    %v991 = vmul.f32 %v980, %v985
    %v992 = vmul.f32 %v981, %v986
    %v993 = vmul.f32 %v982, %v987
    %v994 = vadd.f32 %v991, %v992
    %v995 = vadd.f32 %v994, %v993
    %996 = vadd.xlane.f32.xlu0 %v995
    %v997 = vpop.xlane.xlu0 %996
    %v998 = vld [vmem:[#allocation2] sm:$0x1]
    %v1000 = vperm.slane %v998, 0
    %v1002 = vadd.f32 %v997, %v1000
    %vm1003 = vcmask 7168
    %1004 = vst.msk [vmem:[%s9] sm:$0xff] %vm1003, %v1002
    // Predicated region
    $region46: #{critic_forward.1} parent=1 // pred_check
      _
    $region47: #{critic_forward.1} parent=1 // pred_check_branch
      %1006 = sbr.rel (0) target = $region49
    $region48: #{critic_forward.1} parent=1 // pred_region
      _
    $region49: #{critic_forward.1} parent=1 // pred_fallthru
      _
    // Predicated region
    $region50: #{critic_forward.1} parent=1 // pred_check
      _
    $region51: #{critic_forward.1} parent=1 // pred_check_branch
      %1008 = sbr.rel (0) target = $region53
    $region52: #{critic_forward.1} parent=1 // pred_region
      _
    $region53: #{critic_forward.1} parent=1 // pred_fallthru
      _
    %1009 = vsyncpa [#allocation4], 1
    %1010 = vsyncpa [#allocation6], 1

</llo_original>
